<compile_context>
chip_gen: v7x
topology: tpu7x:2x2x1
jax: 0.10.0
libtpu: 0.0.40
codegen_flags: <defaults>
</compile_context>

<pallas_src>
import functools

import jax
import jax.numpy as jnp
from jax.experimental import pallas as pl
from jax.experimental.pallas import tpu as pltpu

EPS = 1e-4
LANE = 128
TARGET_TILE_BYTES = 2 << 20  # ~2 MiB per operand tile


def _packed_sublanes(dtype) -> int:
    """Native packed sublane tile for a dtype: 8 (32-bit), 16 (16-bit), 32 (8-bit)."""
    return {1: 32, 2: 16}.get(jnp.dtype(dtype).itemsize, 8)


def _tpu_flavor():
    """Return (tensorcores_per_device, has_bf16_vpu) via a robust device-kind check."""
    try:
        kind = jax.devices()[0].device_kind.lower()
    except Exception:  # pragma: no cover - non-TPU / odd backends
        return 1, False
    two_tc = ("7" in kind) or ("v4" in kind)        # v7x / v4 megacore: 2 TCs per device
    bf16_vpu = ("v6" in kind) or ("7" in kind)      # v6e / v7x VPUs have bf16 ALUs
    return (2 if two_tc else 1), bf16_vpu


def _fusion_kernel(w_ref, x0_ref, x1_ref, x2_ref, o_ref, *, compute_dtype):
    # w_ref: (3,) float32 in SMEM -> scalar reads; fold relu + normalization into
    # three pre-scaled scalar weights (scalar-unit work, free in this mem-bound kernel).
    w0 = jnp.maximum(w_ref[0], 0.0)
    w1 = jnp.maximum(w_ref[1], 0.0)
    w2 = jnp.maximum(w_ref[2], 0.0)
    inv = 1.0 / (w0 + w1 + w2 + EPS)
    s0 = (w0 * inv).astype(compute_dtype)
    s1 = (w1 * inv).astype(compute_dtype)
    s2 = (w2 * inv).astype(compute_dtype)
    # When compute_dtype matches the I/O dtype these casts are no-ops (bf16-native
    # path on v6e/v7x, f32 path for f32 inputs); on v5e bf16 inputs are widened.
    x0 = x0_ref[...].astype(compute_dtype)
    x1 = x1_ref[...].astype(compute_dtype)
    x2 = x2_ref[...].astype(compute_dtype)
    o_ref[...] = (x0 * s0 + x1 * s1 + x2 * s2).astype(o_ref.dtype)


def _fuse_xla(x0, x1, x2, weight, out_dtype):
    """Plain-XLA fallback for tiny tensors / the <128-element ragged tail."""
    w = jnp.maximum(weight.astype(jnp.float32), 0.0)
    inv = 1.0 / (w[0] + w[1] + w[2] + EPS)
    out = (x0.astype(jnp.float32) * (w[0] * inv)
           + x1.astype(jnp.float32) * (w[1] * inv)
           + x2.astype(jnp.float32) * (w[2] * inv))
    return out.astype(out_dtype)


def fast_normalized_fusion(x0, x1, x2, weight):
    """weight: (3,) float32 raw parameter (relu applied inside the kernel)."""
    assert x0.shape == x1.shape == x2.shape, "input shapes must match"
    assert x0.dtype == x1.dtype == x2.dtype, "input dtypes must match"
    orig_shape = x0.shape
    in_dtype = x0.dtype
    # Output dtype: keep native floating dtype (bf16 stays bf16); integers -> f32
    # (matches torch promotion against the f32 weight).
    out_dtype = in_dtype if jnp.issubdtype(in_dtype, jnp.floating) else jnp.float32

    num_tc, bf16_vpu = _tpu_flavor()
    compute_dtype = jnp.bfloat16 if (in_dtype == jnp.bfloat16 and bf16_vpu) else jnp.float32

    total = x0.size
    if total == 0:
        return jnp.zeros(orig_shape, out_dtype)

    rem = total % LANE
    aligned = total - rem

    f0, f1, f2 = x0.reshape(-1), x1.reshape(-1), x2.reshape(-1)

    if aligned == 0:
        # Fewer than 128 elements total: a kernel launch is not worth it.
        return _fuse_xla(f0, f1, f2, weight, out_dtype).reshape(orig_shape)

    if rem:
        s0 = f0[:aligned].reshape(-1, LANE)
        s1 = f1[:aligned].reshape(-1, LANE)
        s2 = f2[:aligned].reshape(-1, LANE)
    else:
        s0, s1, s2 = f0.reshape(-1, LANE), f1.reshape(-1, LANE), f2.reshape(-1, LANE)
    M = s0.shape[0]

    in_item = jnp.dtype(in_dtype).itemsize
    out_item = jnp.dtype(out_dtype).itemsize
    packed = max(_packed_sublanes(in_dtype), _packed_sublanes(out_dtype))
    max_item = max(in_item, out_item)

    # Byte-based tile target (~2 MiB per operand), aligned to the packed sublane tile.
    tm_target = max(packed, (TARGET_TILE_BYTES // (LANE * max_item)) // packed * packed)

    if M <= packed:
        tm = M                       # single full-array block (always legal)
    elif num_tc >= 2:
        # 2-TC chips (v7x): force >=2 near-balanced steps so both cores finish together.
        half = -(-M // num_tc)                   # ceil(M / num_tc)
        half = -(-half // packed) * packed       # round up to packed sublane tile
        tm = min(tm_target, half) if half < M else M
    else:
        # Single-TC chips (v5e/v6e): one big tile if it fits the target; otherwise
        # full-size aligned tiles with a possibly-partial last block.
        tm = M if M <= tm_target else tm_target
    grid_m = pl.cdiv(M, tm)

    per_step_bytes = tm * LANE * (3 * in_item + out_item)
    vmem_limit = int(min(max(2 * per_step_bytes + (8 << 20), 16 << 20), 40 << 20))

    tile_spec = pl.BlockSpec((tm, LANE), lambda i: (i, 0))
    cost = pl.CostEstimate(
        flops=5 * aligned,
        transcendentals=0,
        bytes_accessed=aligned * (3 * in_item + out_item),
    )

    main = pl.pallas_call(
        functools.partial(_fusion_kernel, compute_dtype=compute_dtype),
        out_shape=jax.ShapeDtypeStruct((M, LANE), out_dtype),
        grid=(grid_m,),
        in_specs=[
            pl.BlockSpec(memory_space=pltpu.SMEM),  # weight (3,) scalars
            tile_spec,
            tile_spec,
            tile_spec,
        ],
        out_specs=tile_spec,
        compiler_params=pltpu.CompilerParams(
            dimension_semantics=("parallel",),
            vmem_limit_bytes=vmem_limit,
        ),
        cost_estimate=cost,
    )(weight.astype(jnp.float32), s0, s1, s2)

    out_flat = main.reshape(-1)
    if rem:
        tail = _fuse_xla(f0[aligned:], f1[aligned:], f2[aligned:], weight, out_dtype)
        out_flat = jnp.concatenate([out_flat, tail])
    return out_flat.reshape(orig_shape)


def _reference(x0, x1, x2, weight):
    w = jnp.maximum(weight, 0.0)
    num = (x0.astype(jnp.float32) * w[0]
           + x1.astype(jnp.float32) * w[1]
           + x2.astype(jnp.float32) * w[2])
    return num / (w.sum() + EPS)


if __name__ == "__main__":
    key = jax.random.PRNGKey(0)
    k0, k1, k2, kw = jax.random.split(key, 4)

    shape = (2, 4, 16, 16)  # NCHW
    x0 = jax.random.normal(k0, shape, dtype=jnp.float32)
    x1 = jax.random.normal(k1, shape, dtype=jnp.float32)
    x2 = jax.random.normal(k2, shape, dtype=jnp.float32)

    # Module initializes weight = ones(3); perturb deterministically so relu matters.
    weight = jnp.ones((3,), dtype=jnp.float32) + 0.1 * jax.random.normal(
        kw, (3,), dtype=jnp.float32
    )

    # f32 path (matches the PyTorch reference closely).
    out = jax.block_until_ready(fast_normalized_fusion(x0, x1, x2, weight))
    ref = _reference(x0, x1, x2, weight)
    assert out.shape == shape and out.dtype == jnp.float32
    assert jnp.allclose(out, ref, atol=1e-5, rtol=1e-5)

    # bf16 path (native-dtype I/O; bf16 math on v6e/v7x, f32 math on v5e).
    x0b, x1b, x2b = (x.astype(jnp.bfloat16) for x in (x0, x1, x2))
    out_b = jax.block_until_ready(fast_normalized_fusion(x0b, x1b, x2b, weight))
    ref_b = _reference(x0b, x1b, x2b, weight)
    assert out_b.dtype == jnp.bfloat16
    assert jnp.allclose(out_b.astype(jnp.float32), ref_b, atol=2e-2, rtol=2e-2)

    # Awkward size (total not a multiple of 128) exercises the prefix + XLA-tail path.
    odd_shape = (2, 3, 7, 5)
    y0 = jax.random.normal(k0, odd_shape, dtype=jnp.float32)
    y1 = jax.random.normal(k1, odd_shape, dtype=jnp.float32)
    y2 = jax.random.normal(k2, odd_shape, dtype=jnp.float32)
    out_o = jax.block_until_ready(fast_normalized_fusion(y0, y1, y2, weight))
    ref_o = _reference(y0, y1, y2, weight)
    assert out_o.shape == odd_shape
    assert jnp.allclose(out_o, ref_o, atol=1e-5, rtol=1e-5)

    print("KERNEL_OK")
</pallas_src>

<mosaic_0001>
module attributes {stable_mosaic.version = 11 : i64} {
  func.func @_fusion_kernel(%arg0: i32, %arg1: memref<3xf32, #tpu.memory_space<smem>>, %arg2: memref<16x128xf32, #tpu.memory_space<vmem>>, %arg3: memref<16x128xf32, #tpu.memory_space<vmem>>, %arg4: memref<16x128xf32, #tpu.memory_space<vmem>>, %arg5: memref<16x128xf32, #tpu.memory_space<vmem>>) attributes {dimension_semantics = [#tpu.dimension_semantics<parallel>], iteration_bounds = array<i64: 1>, scalar_prefetch = 0 : i64, scratch_operands = 0 : i64, tpu.core_type = #tpu.core_type<tc>, window_params = [{transform_indices = @transform_0, window_bounds = array<i64: 3>}, {transform_indices = @transform_1, window_bounds = array<i64: 16, 128>}, {transform_indices = @transform_2, window_bounds = array<i64: 16, 128>}, {transform_indices = @transform_3, window_bounds = array<i64: 16, 128>}, {transform_indices = @transform_4, window_bounds = array<i64: 16, 128>}]} {
    %c0 = arith.constant 0 : index
    %0 = memref.load %arg1[%c0] : memref<3xf32, #tpu.memory_space<smem>>
    %cst = arith.constant 0.000000e+00 : f32
    %1 = arith.maximumf %0, %cst : f32
    %c1 = arith.constant 1 : index
    %2 = memref.load %arg1[%c1] : memref<3xf32, #tpu.memory_space<smem>>
    %cst_0 = arith.constant 0.000000e+00 : f32
    %3 = arith.maximumf %2, %cst_0 : f32
    %c2 = arith.constant 2 : index
    %4 = memref.load %arg1[%c2] : memref<3xf32, #tpu.memory_space<smem>>
    %cst_1 = arith.constant 0.000000e+00 : f32
    %5 = arith.maximumf %4, %cst_1 : f32
    %6 = arith.addf %1, %3 : f32
    %7 = arith.addf %6, %5 : f32
    %cst_2 = arith.constant 9.99999974E-5 : f32
    %8 = arith.addf %7, %cst_2 : f32
    %cst_3 = arith.constant 1.000000e+00 : f32
    %9 = arith.divf %cst_3, %8 : f32
    %10 = arith.mulf %1, %9 : f32
    %11 = arith.mulf %3, %9 : f32
    %12 = arith.mulf %5, %9 : f32
    %c0_4 = arith.constant 0 : index
    %c0_5 = arith.constant 0 : index
    %13 = vector.load %arg2[%c0_4, %c0_5] : memref<16x128xf32, #tpu.memory_space<vmem>>, vector<16x128xf32>
    %c0_6 = arith.constant 0 : index
    %c0_7 = arith.constant 0 : index
    %14 = vector.load %arg3[%c0_6, %c0_7] : memref<16x128xf32, #tpu.memory_space<vmem>>, vector<16x128xf32>
    %c0_8 = arith.constant 0 : index
    %c0_9 = arith.constant 0 : index
    %15 = vector.load %arg4[%c0_8, %c0_9] : memref<16x128xf32, #tpu.memory_space<vmem>>, vector<16x128xf32>
    %16 = vector.broadcast %10 : f32 to vector<16x128xf32>
    %17 = arith.mulf %13, %16 : vector<16x128xf32>
    %18 = vector.broadcast %11 : f32 to vector<16x128xf32>
    %19 = arith.mulf %14, %18 : vector<16x128xf32>
    %20 = arith.addf %17, %19 : vector<16x128xf32>
    %21 = vector.broadcast %12 : f32 to vector<16x128xf32>
    %22 = arith.mulf %15, %21 : vector<16x128xf32>
    %23 = arith.addf %20, %22 : vector<16x128xf32>
    %c0_10 = arith.constant 0 : index
    %c0_11 = arith.constant 0 : index
    %24 = vector.load %arg5[%c0_10, %c0_11] : memref<16x128xf32, #tpu.memory_space<vmem>>, vector<16x128xf32>
    tpu.vector_store %arg5[%c0_10, %c0_11], %23 {strides = array<i32>} : memref<16x128xf32, #tpu.memory_space<vmem>>, vector<16x128xf32>,
    return
  }
  func.func @transform_0(%arg0: i32) -> i32 {
    %c0_i32 = arith.constant 0 : i32
    %c0_i32_0 = arith.constant 0 : i32
    return %c0_i32 : i32
  }
  func.func @transform_1(%arg0: i32) -> (i32, i32) {
    %c0_i32 = arith.constant 0 : i32
    %c0_i32_0 = arith.constant 0 : i32
    return %arg0, %c0_i32 : i32, i32
  }
  func.func @transform_2(%arg0: i32) -> (i32, i32) {
    %c0_i32 = arith.constant 0 : i32
    %c0_i32_0 = arith.constant 0 : i32
    return %arg0, %c0_i32 : i32, i32
  }
  func.func @transform_3(%arg0: i32) -> (i32, i32) {
    %c0_i32 = arith.constant 0 : i32
    %c0_i32_0 = arith.constant 0 : i32
    return %arg0, %c0_i32 : i32, i32
  }
  func.func @transform_4(%arg0: i32) -> (i32, i32) {
    %c0_i32 = arith.constant 0 : i32
    %c0_i32_0 = arith.constant 0 : i32
    return %arg0, %c0_i32 : i32, i32
  }
}

</mosaic_0001>

<llo_original>
// kernel: tpu_custom_call.1
$region0: #{tpu_custom_call.1}
  #allocation0 [shape = 'u32[]', space=smem, size = 0x4, offset = 0x4, fixed_abs, tag = 'smem constant byte address 0x4 - core index']
  #allocation1 [shape = 'u32[144,128]{1,0:T(1,128)}', space=vmem, size = 0x12000, scoped, tag = 'internal scratch']
  %s0 = inlined_call_operand.hbm [shape: f32[3], index: 0, kind: input, shape index: {}]
  %s1 = inlined_call_operand.hbm [shape: f32[16,128], index: 1, kind: input, shape index: {}]
  %s2 = inlined_call_operand.hbm [shape: f32[16,128], index: 2, kind: input, shape index: {}]
  %s3 = inlined_call_operand.hbm [shape: f32[16,128], index: 3, kind: input, shape index: {}]
  %s4 = inlined_call_operand.hbm [shape: f32[16,128], index: 4, kind: output, shape index: {}]
  %s5 = sld [smem:[#allocation0]]
  $region42: #{tpu_custom_call.1} parent=0
    _
  %s7 = ssub.s32 1, %s5
  %s8 = scalar_select 0, %s7, %s5
  $region1: #{tpu_custom_call.1} parent=0
    #allocation2 [shape = 'u8[512]{0}', space=smem, size = 0x200, scoped, tag = 'input window, operand 0, single buffered']
    #allocation3 [shape = 's32[1]{0}', space=sflag, size = 0x4, scoped, tag = 'scoped memory for tpu_custom_call.1']
    #allocation4 [shape = 's32[1]{0}', space=sflag, size = 0x4, scoped, tag = 'scoped memory for tpu_custom_call.1']
    #allocation5 [shape = 's32[1]{0}', space=sflag, size = 0x4, scoped, tag = 'scoped memory for tpu_custom_call.1']
    #allocation6 [shape = 'u8[8192]{0}', space=vmem, size = 0x2000, scoped, tag = 'input window, operand 1, single buffered']
    #allocation7 [shape = 'u8[8192]{0}', space=vmem, size = 0x2000, scoped, tag = 'input window, operand 2, single buffered']
    #allocation8 [shape = 's32[1]{0}', space=sflag, size = 0x4, scoped, tag = 'scoped memory for tpu_custom_call.1']
    #allocation9 [shape = 'u8[8192]{0}', space=vmem, size = 0x2000, scoped, tag = 'input window, operand 3, single buffered']
    #allocation10 [shape = 'u8[8192]{0}', space=vmem, size = 0x2000, scoped, tag = 'output window, operand 0, single buffered']
    %9 = vsyncpa [#allocation5], 0
    %10 = vsyncpa [#allocation3], 0
    %11 = vsyncpa [#allocation8], 0
    %12 = vsyncpa [#allocation4], 0
    // Predicated region
    $region2: #{tpu_custom_call.1} parent=1 // pred_check
      _
    $region3: #{tpu_custom_call.1} parent=1 // pred_check_branch
      %14 = sbr.rel (0) target = $region5
    $region4: #{tpu_custom_call.1} parent=1 // pred_region
      %s16 = ssub.s32 16, 16
      %17 = vsyncadd [#allocation5], %s16
      %20 = dma.hbm_to_smem %s0, 16, [#allocation2], [#allocation5]
    $region5: #{tpu_custom_call.1} parent=1 // pred_fallthru
      _
    // Predicated region
    $region6: #{tpu_custom_call.1} parent=1 // pred_check
      _
    $region7: #{tpu_custom_call.1} parent=1 // pred_check_branch
      %22 = sbr.rel (0) target = $region9
    $region8: #{tpu_custom_call.1} parent=1 // pred_region
      %s24 = ssub.s32 256, 256
      %25 = vsyncadd [#allocation3], %s24
      %s26 = sshll.u32 [#allocation6], 4
      %s27 = int_to_ptr.vmem [resolvable:$true] %s26
      %32 = dma.hbm_to_vmem [thread:$0]  %s1, 256, %s27, [#allocation3], 128, 128, 8
    $region9: #{tpu_custom_call.1} parent=1 // pred_fallthru
      _
    // Predicated region
    $region10: #{tpu_custom_call.1} parent=1 // pred_check
      _
    $region11: #{tpu_custom_call.1} parent=1 // pred_check_branch
      %34 = sbr.rel (0) target = $region13
    $region12: #{tpu_custom_call.1} parent=1 // pred_region
      %s36 = ssub.s32 256, 256
      %37 = vsyncadd [#allocation8], %s36
      %s38 = sshll.u32 [#allocation7], 4
      %s39 = int_to_ptr.vmem [resolvable:$true] %s38
      %44 = dma.hbm_to_vmem [thread:$0]  %s2, 256, %s39, [#allocation8], 128, 128, 8
    $region13: #{tpu_custom_call.1} parent=1 // pred_fallthru
      _
    // Predicated region
    $region14: #{tpu_custom_call.1} parent=1 // pred_check
      _
    $region15: #{tpu_custom_call.1} parent=1 // pred_check_branch
      %46 = sbr.rel (0) target = $region17
    $region16: #{tpu_custom_call.1} parent=1 // pred_region
      %s48 = ssub.s32 256, 256
      %49 = vsyncadd [#allocation8], %s48
      %s50 = sshll.u32 [#allocation9], 4
      %s51 = int_to_ptr.vmem [resolvable:$true] %s50
      %56 = dma.hbm_to_vmem [thread:$0]  %s3, 256, %s51, [#allocation8], 128, 128, 8
    $region17: #{tpu_custom_call.1} parent=1 // pred_fallthru
      _
    // Predicated region
    $region18: #{tpu_custom_call.1} parent=1 // pred_check
      _
    $region19: #{tpu_custom_call.1} parent=1 // pred_check_branch
      %58 = sbr.rel (0) target = $region21
    $region20: #{tpu_custom_call.1} parent=1 // pred_region
      %59 = dma.done [#allocation5], 16
    $region21: #{tpu_custom_call.1} parent=1 // pred_fallthru
      _
    // Predicated region
    $region22: #{tpu_custom_call.1} parent=1 // pred_check
      _
    $region23: #{tpu_custom_call.1} parent=1 // pred_check_branch
      %61 = sbr.rel (0) target = $region25
    $region24: #{tpu_custom_call.1} parent=1 // pred_region
      %62 = dma.done [#allocation3], 256
    $region25: #{tpu_custom_call.1} parent=1 // pred_fallthru
      _
    // Predicated region
    $region26: #{tpu_custom_call.1} parent=1 // pred_check
      _
    $region27: #{tpu_custom_call.1} parent=1 // pred_check_branch
      %64 = sbr.rel (0) target = $region29
    $region28: #{tpu_custom_call.1} parent=1 // pred_region
      %65 = dma.done [#allocation8], 256
    $region29: #{tpu_custom_call.1} parent=1 // pred_fallthru
      _
    // Predicated region
    $region30: #{tpu_custom_call.1} parent=1 // pred_check
      _
    $region31: #{tpu_custom_call.1} parent=1 // pred_check_branch
      %67 = sbr.rel (0) target = $region33
    $region32: #{tpu_custom_call.1} parent=1 // pred_region
      %68 = dma.done [#allocation8], 256
    $region33: #{tpu_custom_call.1} parent=1 // pred_fallthru
      _
    %69 = sfence
    %s70 = sld [smem:[#allocation2]]
    %s71 = smax.f32 %s70, 0.0
    %s72 = sld [smem:[#allocation2 + $0x1]]
    %s73 = smax.f32 %s72, 0.0
    %s74 = sld [smem:[#allocation2 + $0x2]]
    %s75 = smax.f32 %s74, 0.0
    %s76 = sadd.f32 %s71, %s73
    %s77 = sadd.f32 %s76, %s75
    %s78 = sadd.f32 %s77, 0.0001
    %v79 = vstv %s78
    %v80 = vrcp.pop %v79
    %s81 = vtos %v80
    %s82 = smul.f32 %s71, %s81
    %s83 = smul.f32 %s73, %s81
    %s84 = smul.f32 %s75, %s81
    %v85 = vld [vmem:[#allocation6] sm:$0xff]
    %v86 = vld [vmem:[#allocation6 + $0x8] sm:$0xff]
    %v87 = vld [vmem:[#allocation7] sm:$0xff]
    %v88 = vld [vmem:[#allocation7 + $0x8] sm:$0xff]
    %v89 = vld [vmem:[#allocation9] sm:$0xff]
    %v90 = vld [vmem:[#allocation9 + $0x8] sm:$0xff]
    %v91 = vstv %s82
    %v92 = vmul.f32 %v85, %v91
    %v93 = vmul.f32 %v86, %v91
    %v94 = vstv %s83
    %v95 = vmul.f32 %v87, %v94
    %v96 = vmul.f32 %v88, %v94
    %v97 = vadd.f32 %v92, %v95
    %v98 = vadd.f32 %v93, %v96
    %v99 = vstv %s84
    %v100 = vmul.f32 %v89, %v99
    %v101 = vmul.f32 %v90, %v99
    %v102 = vadd.f32 %v97, %v100
    %v103 = vadd.f32 %v98, %v101
    %104 = vst [vmem:[#allocation10] sm:$0xff] %v102
    %105 = vst [vmem:[#allocation10 + $0x8] sm:$0xff] %v103
    // Predicated region
    $region34: #{tpu_custom_call.1} parent=1 // pred_check
      _
    $region35: #{tpu_custom_call.1} parent=1 // pred_check_branch
      %107 = sbr.rel (0) target = $region37
    $region36: #{tpu_custom_call.1} parent=1 // pred_region
      %s109 = ssub.s32 256, 256
      %110 = vsyncadd [#allocation4], %s109
      %s111 = sshll.u32 [#allocation10], 4
      %s112 = int_to_ptr.vmem [resolvable:$true] %s111
      %117 = dma.vmem_to_hbm [thread:$0]  %s112, 256, %s4, [#allocation4], 128, 128, 8
    $region37: #{tpu_custom_call.1} parent=1 // pred_fallthru
      _
    // Predicated region
    $region38: #{tpu_custom_call.1} parent=1 // pred_check
      _
    $region39: #{tpu_custom_call.1} parent=1 // pred_check_branch
      %119 = sbr.rel (0) target = $region41
    $region40: #{tpu_custom_call.1} parent=1 // pred_region
      %120 = dma.done [#allocation4], 256
    $region41: #{tpu_custom_call.1} parent=1 // pred_fallthru
      _
    %121 = vsyncpa [#allocation3], 1
    %122 = vsyncpa [#allocation8], 1
    %123 = vsyncpa [#allocation4], 1
    %124 = vsyncpa [#allocation5], 1

</llo_original>
